<compile_context>
chip_gen: v5e
topology: v5e:2x2
jax: 0.10.0
libtpu: 0.0.40
codegen_flags: <defaults>
</compile_context>

<pallas_src>
import math

import jax
import jax.numpy as jnp
from jax.experimental import pallas as pl
from jax.experimental.pallas import tpu as pltpu


def _round_up(x, m):
    return ((x + m - 1) // m) * m


def _cdiv(a, b):
    return (a + b - 1) // b


def _make_kernel(n_hidden, out_block_shape, approx_sigmoid):
    """Ref order: x, (w_h, b_h) * n_hidden, w_head, b_head, out."""

    def kernel(*refs):
        x_ref = refs[0]
        out_ref = refs[-1]

        y = x_ref[...]
        for i in range(n_hidden):                               # static unroll
            w_ref = refs[1 + 2 * i]
            b_ref = refs[2 + 2 * i]
            acc = jnp.dot(y.astype(w_ref.dtype), w_ref[...],
                          preferred_element_type=jnp.float32)
            acc = acc + b_ref[...].astype(jnp.float32)
            if approx_sigmoid:
                # exp + approx reciprocal both ride the EUP slot (no VALU div)
                y = pl.reciprocal(1.0 + jnp.exp(-acc), approx=True)
            else:
                y = jax.nn.sigmoid(acc)                          # exp -> EUP

        w_ref = refs[1 + 2 * n_hidden]
        b_ref = refs[2 + 2 * n_hidden]
        head = jnp.dot(y.astype(w_ref.dtype), w_ref[...],
                       preferred_element_type=jnp.float32)
        head = head + b_ref[...].astype(jnp.float32)
        out = jnp.exp(head)                                      # exp -> EUP
        # Pack batch rows into lanes when requested (out_block_shape differs
        # from head.shape); no-op reshape otherwise.
        out_ref[...] = out.reshape(out_block_shape).astype(out_ref.dtype)

    return kernel


def _const_spec(arr, buffer_count):
    """Whole-array block with a constant index map: fetched once, VMEM-resident."""
    nd = arr.ndim
    idx = lambda i: (0,) * nd
    if buffer_count is None:
        return pl.BlockSpec(arr.shape, idx)
    # Constant blocks never change -> a single pipeline buffer is enough.
    return pl.BlockSpec(arr.shape, idx, pipeline_mode=pl.Buffered(buffer_count=buffer_count))


def _vmem_budget_bytes():
    """Generation-aware VMEM cap with headroom (works on v5e/v6e/v7x)."""
    try:
        cap = int(pltpu.get_tpu_info().vmem_capacity_bytes)
    except Exception:
        cap = 64 * 1024 * 1024        # conservative: v7x per-core VMEM
    return max(int(0.85 * cap), 32 * 1024 * 1024)


def _forward_impl(x, params, *, compute_dtype, approx_sigmoid,
                  pack_output, const_buffer_count):
    B, D = x.shape
    hidden = params["hidden"]
    n_hidden = len(hidden)
    L = params["wa"].shape[1]
    H = params["wa"].shape[0]
    n_out = 2 * L
    w_dtype = compute_dtype

    # ---- hidden weights: pad widths to 128 lanes, cast at the DMA boundary ----
    # Exact: padded activation columns (sigmoid(0)=0.5) multiply zero rows of
    # the next layer's (padded) weight.
    weight_args = []
    cur_in = D
    max_width = max(D, _round_up(n_out, 128))
    for (w, b) in hidden:
        k, n = w.shape
        n_p = _round_up(n, 128)
        w_p = jnp.pad(w, ((0, cur_in - k), (0, n_p - n))).astype(w_dtype)
        b_p = jnp.pad(b, ((0, 0), (0, n_p - n))).astype(w_dtype)
        weight_args += [w_p, b_p]
        cur_in = n_p
        max_width = max(max_width, n_p)

    # ---- VMEM estimate (no double counting) & batch-tile sweep ----
    budget = _vmem_budget_bytes()
    bpe = jnp.dtype(w_dtype).itemsize
    head_elems_worst = (cur_in + 1) * _round_up(n_out, 128)

    def est_vmem(tb, weight_buf_count):
        weight_elems = sum(int(a.size) for a in weight_args) + head_elems_worst
        w_bytes = weight_elems * bpe * weight_buf_count
        x_bytes = 2 * tb * D * 4                       # double-buffered x tile
        out_bytes = 2 * tb * _round_up(n_out, 128) * 4  # double-buffered out tile
        act_bytes = 2 * tb * max_width * 4             # live f32 activations
        return w_bytes + x_bytes + out_bytes + act_bytes + (1 << 20)

    tb_fit = 8
    for cand in (4096, 2048, 1024, 512, 256, 128, 64, 32, 16, 8):
        if est_vmem(cand, 2) <= budget:                # conservative (2 buffers)
            tb_fit = cand
            break

    B8 = _round_up(B, 8)
    TB_cap = min(tb_fit, B8)
    num_tiles = _cdiv(B8, TB_cap)
    if B8 >= 128 and num_tiles < 2:
        num_tiles = 2                 # keep v7x's second TensorCore busy
    if num_tiles > 1 and num_tiles % 2:
        num_tiles += 1                # even split across 2 cores
    TB = _round_up(_cdiv(B, num_tiles), 8)   # minimum-padding tile size

    # ---- output packing: P batch rows per 128-lane output row ----
    g = math.gcd(n_out, 128)
    P = 128 // g
    if pack_output and P > 1 and num_tiles > 1 and TB % (8 * P) != 0:
        tb_alt = _round_up(_cdiv(B, num_tiles), 8 * P)
        if tb_alt <= tb_fit:
            TB = tb_alt
    B_pad = TB * num_tiles

    can_pack = (pack_output and TB % P == 0 and
                ((TB // P) % 8 == 0 or num_tiles == 1))
    if can_pack:
        n_head = n_out
        block_out = (TB // P, P * n_out)
        out_rows, out_lanes = B_pad // P, P * n_out
    else:
        P = 1
        n_head = _round_up(n_out, 128)
        block_out = (TB, n_head)
        out_rows, out_lanes = B_pad, n_head

    # ---- fused alpha|beta head ----
    w_head = jnp.concatenate([params["wa"], params["wb"]], axis=1)
    b_head = jnp.concatenate([params["ba"], params["bb"]], axis=1)
    w_head = jnp.pad(w_head, ((0, cur_in - H), (0, n_head - n_out))).astype(w_dtype)
    b_head = jnp.pad(b_head, ((0, 0), (0, n_head - n_out))).astype(w_dtype)
    weight_args += [w_head, b_head]

    # ---- batch padding ----
    if B_pad != B:
        x = jnp.pad(x, ((0, B_pad - B), (0, 0)))

    # ---- specs ----
    in_specs = [pl.BlockSpec((TB, D), lambda i: (i, 0))]
    for a in weight_args:
        in_specs.append(_const_spec(a, const_buffer_count))
    out_spec = pl.BlockSpec(block_out, lambda i: (i, 0))
    out_shape = jax.ShapeDtypeStruct((out_rows, out_lanes), jnp.float32)

    buf = const_buffer_count if const_buffer_count else 2
    weight_bytes = sum(int(a.size) for a in weight_args) * bpe * buf
    tile_bytes = 2 * TB * D * 4 + 2 * block_out[0] * block_out[1] * 4
    act_bytes = 2 * TB * max(max_width, n_head) * 4
    vmem_limit = int(min(budget,
                         max(16 << 20,
                             weight_bytes + tile_bytes + act_bytes + (1 << 20))))

    out = pl.pallas_call(
        _make_kernel(n_hidden, block_out, approx_sigmoid),
        out_shape=out_shape,
        grid=(num_tiles,),
        in_specs=in_specs,
        out_specs=out_spec,
        compiler_params=pltpu.CompilerParams(
            dimension_semantics=("parallel",),
            vmem_limit_bytes=vmem_limit),
    )(x, *weight_args)

    if can_pack:
        full = out.reshape(B_pad, n_out)
    else:
        full = out[:, :n_out]
    alpha = full[:B, :L]
    beta = full[:B, L:n_out]
    return alpha, beta


def network_gamma_forward(x, params, *, compute_dtype=jnp.float32,
                          approx_sigmoid=False):
    """Fused NetworkGamma forward.

    x:      [B, D] float32
    params: {"hidden": [(w, b), ...], "wa", "ba", "wb", "bb"}
            weights stored [in, out]; biases [1, out].
    Returns (alpha, beta), each [B, L] float32.
    """
    # Most aggressive config first; fall back if a feature does not lower on
    # the current jax/Mosaic version. All configs are numerically equivalent.
    configs = (
        dict(pack_output=True, const_buffer_count=1),
        dict(pack_output=True, const_buffer_count=None),
        dict(pack_output=False, const_buffer_count=None),
    )
    last_err = None
    for cfg in configs:
        try:
            alpha, beta = _forward_impl(
                x, params, compute_dtype=compute_dtype,
                approx_sigmoid=approx_sigmoid, **cfg)
            jax.block_until_ready((alpha, beta))
            return alpha, beta
        except Exception as e:   # lowering/compile failure -> next config
            last_err = e
    raise last_err


def init_params(key, sizes):
    """sizes = [in, hidden..., gamma_dim], matching NetworkGamma(sizes)."""
    n_hidden = len(sizes) - 2
    keys = jax.random.split(key, 2 * n_hidden + 4)
    scale = 0.5

    hidden = []
    ki = 0
    for inp, out in zip(sizes[:-2], sizes[1:-1]):
        w = scale * jax.random.normal(keys[ki], (inp, out), jnp.float32); ki += 1
        b = scale * jax.random.normal(keys[ki], (1, out), jnp.float32); ki += 1
        hidden.append((w, b))

    H, Lat = sizes[-2], sizes[-1]
    wa = scale * jax.random.normal(keys[ki], (H, Lat), jnp.float32); ki += 1
    ba = scale * jax.random.normal(keys[ki], (1, Lat), jnp.float32); ki += 1
    wb = scale * jax.random.normal(keys[ki], (H, Lat), jnp.float32); ki += 1
    bb = scale * jax.random.normal(keys[ki], (1, Lat), jnp.float32); ki += 1
    return {"hidden": hidden, "wa": wa, "ba": ba, "wb": wb, "bb": bb}


def network_gamma_ref(x, params):
    """Pure-JAX reference (matches PyTorch NetworkGamma.forward)."""
    y = x
    for w, b in params["hidden"]:
        y = jax.nn.sigmoid(y @ w + b)
    alpha = jnp.exp(y @ params["wa"] + params["ba"])
    beta = jnp.exp(y @ params["wb"] + params["bb"])
    return alpha, beta


if __name__ == "__main__":
    key = jax.random.PRNGKey(0)
    k_x, k_p = jax.random.split(key)

    # small NetworkGamma([64, 32, 32, 8]): two Linear+Sigmoid hidden layers,
    # then alpha/beta heads of width 8.
    sizes = [64, 32, 32, 8]
    BATCH = 16

    x = jax.random.normal(k_x, (BATCH, sizes[0]), dtype=jnp.float32)
    params = init_params(k_p, sizes)

    alpha, beta = network_gamma_forward(x, params)
    jax.block_until_ready((alpha, beta))

    alpha_r, beta_r = network_gamma_ref(x, params)
    assert alpha.shape == (BATCH, sizes[-1]) and beta.shape == (BATCH, sizes[-1])
    assert jnp.allclose(alpha, alpha_r, atol=1e-5, rtol=1e-5)
    assert jnp.allclose(beta, beta_r, atol=1e-5, rtol=1e-5)

    print("KERNEL_OK")
</pallas_src>

<mosaic_0001>
module attributes {stable_mosaic.version = 11 : i64} {
  func.func @kernel(%arg0: i32, %arg1: memref<16x64xf32, #tpu.memory_space<vmem>>, %arg2: memref<64x128xf32, #tpu.memory_space<vmem>>, %arg3: memref<1x128xf32, #tpu.memory_space<vmem>>, %arg4: memref<128x128xf32, #tpu.memory_space<vmem>>, %arg5: memref<1x128xf32, #tpu.memory_space<vmem>>, %arg6: memref<128x16xf32, #tpu.memory_space<vmem>>, %arg7: memref<1x16xf32, #tpu.memory_space<vmem>>, %arg8: memref<2x128xf32, #tpu.memory_space<vmem>>) attributes {dimension_semantics = [#tpu.dimension_semantics<parallel>], iteration_bounds = array<i64: 1>, scalar_prefetch = 0 : i64, scratch_operands = 0 : i64, tpu.core_type = #tpu.core_type<tc>, window_params = [{transform_indices = @transform_0, window_bounds = array<i64: 16, 64>}, {pipeline_mode = #tpu.pipeline_mode<synchronous>, transform_indices = @transform_1, window_bounds = array<i64: 64, 128>}, {pipeline_mode = #tpu.pipeline_mode<synchronous>, transform_indices = @transform_2, window_bounds = array<i64: 1, 128>}, {pipeline_mode = #tpu.pipeline_mode<synchronous>, transform_indices = @transform_3, window_bounds = array<i64: 128, 128>}, {pipeline_mode = #tpu.pipeline_mode<synchronous>, transform_indices = @transform_4, window_bounds = array<i64: 1, 128>}, {pipeline_mode = #tpu.pipeline_mode<synchronous>, transform_indices = @transform_5, window_bounds = array<i64: 128, 16>}, {pipeline_mode = #tpu.pipeline_mode<synchronous>, transform_indices = @transform_6, window_bounds = array<i64: 1, 16>}, {transform_indices = @transform_7, window_bounds = array<i64: 2, 128>}]} {
    %c0 = arith.constant 0 : index
    %c0_0 = arith.constant 0 : index
    %0 = vector.load %arg1[%c0, %c0_0] : memref<16x64xf32, #tpu.memory_space<vmem>>, vector<16x64xf32>
    %c0_1 = arith.constant 0 : index
    %c0_2 = arith.constant 0 : index
    %1 = vector.load %arg2[%c0_1, %c0_2] : memref<64x128xf32, #tpu.memory_space<vmem>>, vector<64x128xf32>
    %cst = arith.constant dense<0.000000e+00> : vector<16x128xf32>
    %2 = tpu.matmul %0, %1, %cst {dimension_numbers = #tpu.dot_dimension_numbers<[1], [0], [0], [1], [0, 0, 1, 1], [], []>} : vector<16x64xf32>, vector<64x128xf32>, vector<16x128xf32> -> vector<16x128xf32>
    %c0_3 = arith.constant 0 : index
    %c0_4 = arith.constant 0 : index
    %3 = vector.load %arg3[%c0_3, %c0_4] : memref<1x128xf32, #tpu.memory_space<vmem>>, vector<1x128xf32>
    %4 = vector.broadcast %3 : vector<1x128xf32> to vector<16x128xf32>
    %5 = arith.addf %2, %4 : vector<16x128xf32>
    %6 = arith.negf %5 : vector<16x128xf32>
    %7 = math.exp %6 : vector<16x128xf32>
    %cst_5 = arith.constant 1.000000e+00 : f32
    %8 = vector.broadcast %cst_5 : f32 to vector<16x128xf32>
    %9 = arith.addf %8, %7 : vector<16x128xf32>
    %10 = arith.divf %8, %9 : vector<16x128xf32>
    %c0_6 = arith.constant 0 : index
    %c0_7 = arith.constant 0 : index
    %11 = vector.load %arg4[%c0_6, %c0_7] : memref<128x128xf32, #tpu.memory_space<vmem>>, vector<128x128xf32>
    %cst_8 = arith.constant dense<0.000000e+00> : vector<16x128xf32>
    %12 = tpu.matmul %10, %11, %cst_8 {dimension_numbers = #tpu.dot_dimension_numbers<[1], [0], [0], [1], [0, 0, 1, 1], [], []>} : vector<16x128xf32>, vector<128x128xf32>, vector<16x128xf32> -> vector<16x128xf32>
    %c0_9 = arith.constant 0 : index
    %c0_10 = arith.constant 0 : index
    %13 = vector.load %arg5[%c0_9, %c0_10] : memref<1x128xf32, #tpu.memory_space<vmem>>, vector<1x128xf32>
    %14 = vector.broadcast %13 : vector<1x128xf32> to vector<16x128xf32>
    %15 = arith.addf %12, %14 : vector<16x128xf32>
    %16 = arith.negf %15 : vector<16x128xf32>
    %17 = math.exp %16 : vector<16x128xf32>
    %cst_11 = arith.constant 1.000000e+00 : f32
    %18 = vector.broadcast %cst_11 : f32 to vector<16x128xf32>
    %19 = arith.addf %18, %17 : vector<16x128xf32>
    %20 = arith.divf %18, %19 : vector<16x128xf32>
    %c0_12 = arith.constant 0 : index
    %c0_13 = arith.constant 0 : index
    %21 = vector.load %arg6[%c0_12, %c0_13] : memref<128x16xf32, #tpu.memory_space<vmem>>, vector<128x16xf32>
    %cst_14 = arith.constant dense<0.000000e+00> : vector<16x16xf32>
    %22 = tpu.matmul %20, %21, %cst_14 {dimension_numbers = #tpu.dot_dimension_numbers<[1], [0], [0], [1], [0, 0, 1, 1], [], []>} : vector<16x128xf32>, vector<128x16xf32>, vector<16x16xf32> -> vector<16x16xf32>
    %c0_15 = arith.constant 0 : index
    %c0_16 = arith.constant 0 : index
    %23 = vector.load %arg7[%c0_15, %c0_16] : memref<1x16xf32, #tpu.memory_space<vmem>>, vector<1x16xf32>
    %24 = vector.broadcast %23 : vector<1x16xf32> to vector<16x16xf32>
    %25 = arith.addf %22, %24 : vector<16x16xf32>
    %26 = math.exp %25 : vector<16x16xf32>
    %27 = vector.shape_cast %26 : vector<16x16xf32> to vector<2x128xf32>
    %c0_17 = arith.constant 0 : index
    %c0_18 = arith.constant 0 : index
    %28 = vector.load %arg8[%c0_17, %c0_18] : memref<2x128xf32, #tpu.memory_space<vmem>>, vector<2x128xf32>
    tpu.vector_store %arg8[%c0_17, %c0_18], %27 {strides = array<i32>} : memref<2x128xf32, #tpu.memory_space<vmem>>, vector<2x128xf32>,
    return
  }
  func.func @transform_0(%arg0: i32) -> (i32, i32) {
    %c0_i32 = arith.constant 0 : i32
    %c0_i32_0 = arith.constant 0 : i32
    return %arg0, %c0_i32 : i32, i32
  }
  func.func @transform_1(%arg0: i32) -> (i32, i32) {
    %c0_i32 = arith.constant 0 : i32
    %c0_i32_0 = arith.constant 0 : i32
    %c0_i32_1 = arith.constant 0 : i32
    return %c0_i32, %c0_i32_0 : i32, i32
  }
  func.func @transform_2(%arg0: i32) -> (i32, i32) {
    %c0_i32 = arith.constant 0 : i32
    %c0_i32_0 = arith.constant 0 : i32
    %c0_i32_1 = arith.constant 0 : i32
    return %c0_i32, %c0_i32_0 : i32, i32
  }
  func.func @transform_3(%arg0: i32) -> (i32, i32) {
    %c0_i32 = arith.constant 0 : i32
    %c0_i32_0 = arith.constant 0 : i32
    %c0_i32_1 = arith.constant 0 : i32
    return %c0_i32, %c0_i32_0 : i32, i32
  }
  func.func @transform_4(%arg0: i32) -> (i32, i32) {
    %c0_i32 = arith.constant 0 : i32
    %c0_i32_0 = arith.constant 0 : i32
    %c0_i32_1 = arith.constant 0 : i32
    return %c0_i32, %c0_i32_0 : i32, i32
  }
  func.func @transform_5(%arg0: i32) -> (i32, i32) {
    %c0_i32 = arith.constant 0 : i32
    %c0_i32_0 = arith.constant 0 : i32
    %c0_i32_1 = arith.constant 0 : i32
    return %c0_i32, %c0_i32_0 : i32, i32
  }
  func.func @transform_6(%arg0: i32) -> (i32, i32) {
    %c0_i32 = arith.constant 0 : i32
    %c0_i32_0 = arith.constant 0 : i32
    %c0_i32_1 = arith.constant 0 : i32
    return %c0_i32, %c0_i32_0 : i32, i32
  }
  func.func @transform_7(%arg0: i32) -> (i32, i32) {
    %c0_i32 = arith.constant 0 : i32
    %c0_i32_0 = arith.constant 0 : i32
    return %arg0, %c0_i32 : i32, i32
  }
}

module attributes {stable_mosaic.version = 11 : i64} {
  func.func @kernel(%arg0: i32, %arg1: memref<16x64xf32, #tpu.memory_space<vmem>>, %arg2: memref<64x128xf32, #tpu.memory_space<vmem>>, %arg3: memref<1x128xf32, #tpu.memory_space<vmem>>, %arg4: memref<128x128xf32, #tpu.memory_space<vmem>>, %arg5: memref<1x128xf32, #tpu.memory_space<vmem>>, %arg6: memref<128x16xf32, #tpu.memory_space<vmem>>, %arg7: memref<1x16xf32, #tpu.memory_space<vmem>>, %arg8: memref<2x128xf32, #tpu.memory_space<vmem>>) attributes {dimension_semantics = [#tpu.dimension_semantics<parallel>], iteration_bounds = array<i64: 1>, scalar_prefetch = 0 : i64, scratch_operands = 0 : i64, tpu.core_type = #tpu.core_type<tc>, window_params = [{transform_indices = @transform_0, window_bounds = array<i64: 16, 64>}, {pipeline_mode = #tpu.pipeline_mode<synchronous>, transform_indices = @transform_1, window_bounds = array<i64: 64, 128>}, {pipeline_mode = #tpu.pipeline_mode<synchronous>, transform_indices = @transform_2, window_bounds = array<i64: 1, 128>}, {pipeline_mode = #tpu.pipeline_mode<synchronous>, transform_indices = @transform_3, window_bounds = array<i64: 128, 128>}, {pipeline_mode = #tpu.pipeline_mode<synchronous>, transform_indices = @transform_4, window_bounds = array<i64: 1, 128>}, {pipeline_mode = #tpu.pipeline_mode<synchronous>, transform_indices = @transform_5, window_bounds = array<i64: 128, 16>}, {pipeline_mode = #tpu.pipeline_mode<synchronous>, transform_indices = @transform_6, window_bounds = array<i64: 1, 16>}, {transform_indices = @transform_7, window_bounds = array<i64: 2, 128>}]} {
    %c0 = arith.constant 0 : index
    %c0_0 = arith.constant 0 : index
    %0 = vector.load %arg1[%c0, %c0_0] : memref<16x64xf32, #tpu.memory_space<vmem>>, vector<16x64xf32>
    %c0_1 = arith.constant 0 : index
    %c0_2 = arith.constant 0 : index
    %1 = vector.load %arg2[%c0_1, %c0_2] : memref<64x128xf32, #tpu.memory_space<vmem>>, vector<64x128xf32>
    %cst = arith.constant dense<0.000000e+00> : vector<16x128xf32>
    %2 = tpu.matmul %0, %1, %cst {dimension_numbers = #tpu.dot_dimension_numbers<[1], [0], [0], [1], [0, 0, 1, 1], [], []>} : vector<16x64xf32>, vector<64x128xf32>, vector<16x128xf32> -> vector<16x128xf32>
    %c0_3 = arith.constant 0 : index
    %c0_4 = arith.constant 0 : index
    %3 = vector.load %arg3[%c0_3, %c0_4] : memref<1x128xf32, #tpu.memory_space<vmem>>, vector<1x128xf32>
    %4 = vector.broadcast %3 : vector<1x128xf32> to vector<16x128xf32>
    %5 = arith.addf %2, %4 : vector<16x128xf32>
    %6 = arith.negf %5 : vector<16x128xf32>
    %7 = math.exp %6 : vector<16x128xf32>
    %cst_5 = arith.constant 1.000000e+00 : f32
    %8 = vector.broadcast %cst_5 : f32 to vector<16x128xf32>
    %9 = arith.addf %8, %7 : vector<16x128xf32>
    %10 = arith.divf %8, %9 : vector<16x128xf32>
    %c0_6 = arith.constant 0 : index
    %c0_7 = arith.constant 0 : index
    %11 = vector.load %arg4[%c0_6, %c0_7] : memref<128x128xf32, #tpu.memory_space<vmem>>, vector<128x128xf32>
    %cst_8 = arith.constant dense<0.000000e+00> : vector<16x128xf32>
    %12 = tpu.matmul %10, %11, %cst_8 {dimension_numbers = #tpu.dot_dimension_numbers<[1], [0], [0], [1], [0, 0, 1, 1], [], []>} : vector<16x128xf32>, vector<128x128xf32>, vector<16x128xf32> -> vector<16x128xf32>
    %c0_9 = arith.constant 0 : index
    %c0_10 = arith.constant 0 : index
    %13 = vector.load %arg5[%c0_9, %c0_10] : memref<1x128xf32, #tpu.memory_space<vmem>>, vector<1x128xf32>
    %14 = vector.broadcast %13 : vector<1x128xf32> to vector<16x128xf32>
    %15 = arith.addf %12, %14 : vector<16x128xf32>
    %16 = arith.negf %15 : vector<16x128xf32>
    %17 = math.exp %16 : vector<16x128xf32>
    %cst_11 = arith.constant 1.000000e+00 : f32
    %18 = vector.broadcast %cst_11 : f32 to vector<16x128xf32>
    %19 = arith.addf %18, %17 : vector<16x128xf32>
    %20 = arith.divf %18, %19 : vector<16x128xf32>
    %c0_12 = arith.constant 0 : index
    %c0_13 = arith.constant 0 : index
    %21 = vector.load %arg6[%c0_12, %c0_13] : memref<128x16xf32, #tpu.memory_space<vmem>>, vector<128x16xf32>
    %cst_14 = arith.constant dense<0.000000e+00> : vector<16x16xf32>
    %22 = tpu.matmul %20, %21, %cst_14 {dimension_numbers = #tpu.dot_dimension_numbers<[1], [0], [0], [1], [0, 0, 1, 1], [], []>} : vector<16x128xf32>, vector<128x16xf32>, vector<16x16xf32> -> vector<16x16xf32>
    %c0_15 = arith.constant 0 : index
    %c0_16 = arith.constant 0 : index
    %23 = vector.load %arg7[%c0_15, %c0_16] : memref<1x16xf32, #tpu.memory_space<vmem>>, vector<1x16xf32>
    %24 = vector.broadcast %23 : vector<1x16xf32> to vector<16x16xf32>
    %25 = arith.addf %22, %24 : vector<16x16xf32>
    %26 = math.exp %25 : vector<16x16xf32>
    %27 = vector.shape_cast %26 : vector<16x16xf32> to vector<2x128xf32>
    %c0_17 = arith.constant 0 : index
    %c0_18 = arith.constant 0 : index
    %28 = vector.load %arg8[%c0_17, %c0_18] : memref<2x128xf32, #tpu.memory_space<vmem>>, vector<2x128xf32>
    tpu.vector_store %arg8[%c0_17, %c0_18], %27 {strides = array<i32>} : memref<2x128xf32, #tpu.memory_space<vmem>>, vector<2x128xf32>,
    return
  }
  func.func @transform_0(%arg0: i32) -> (i32, i32) {
    %c0_i32 = arith.constant 0 : i32
    %c0_i32_0 = arith.constant 0 : i32
    return %arg0, %c0_i32 : i32, i32
  }
  func.func @transform_1(%arg0: i32) -> (i32, i32) {
    %c0_i32 = arith.constant 0 : i32
    %c0_i32_0 = arith.constant 0 : i32
    %c0_i32_1 = arith.constant 0 : i32
    return %c0_i32, %c0_i32_0 : i32, i32
  }
  func.func @transform_2(%arg0: i32) -> (i32, i32) {
    %c0_i32 = arith.constant 0 : i32
    %c0_i32_0 = arith.constant 0 : i32
    %c0_i32_1 = arith.constant 0 : i32
    return %c0_i32, %c0_i32_0 : i32, i32
  }
  func.func @transform_3(%arg0: i32) -> (i32, i32) {
    %c0_i32 = arith.constant 0 : i32
    %c0_i32_0 = arith.constant 0 : i32
    %c0_i32_1 = arith.constant 0 : i32
    return %c0_i32, %c0_i32_0 : i32, i32
  }
  func.func @transform_4(%arg0: i32) -> (i32, i32) {
    %c0_i32 = arith.constant 0 : i32
    %c0_i32_0 = arith.constant 0 : i32
    %c0_i32_1 = arith.constant 0 : i32
    return %c0_i32, %c0_i32_0 : i32, i32
  }
  func.func @transform_5(%arg0: i32) -> (i32, i32) {
    %c0_i32 = arith.constant 0 : i32
    %c0_i32_0 = arith.constant 0 : i32
    %c0_i32_1 = arith.constant 0 : i32
    return %c0_i32, %c0_i32_0 : i32, i32
  }
  func.func @transform_6(%arg0: i32) -> (i32, i32) {
    %c0_i32 = arith.constant 0 : i32
    %c0_i32_0 = arith.constant 0 : i32
    %c0_i32_1 = arith.constant 0 : i32
    return %c0_i32, %c0_i32_0 : i32, i32
  }
  func.func @transform_7(%arg0: i32) -> (i32, i32) {
    %c0_i32 = arith.constant 0 : i32
    %c0_i32_0 = arith.constant 0 : i32
    return %arg0, %c0_i32 : i32, i32
  }
}

module attributes {stable_mosaic.version = 11 : i64} {
  func.func @kernel(%arg0: i32, %arg1: memref<16x64xf32, #tpu.memory_space<vmem>>, %arg2: memref<64x128xf32, #tpu.memory_space<vmem>>, %arg3: memref<1x128xf32, #tpu.memory_space<vmem>>, %arg4: memref<128x128xf32, #tpu.memory_space<vmem>>, %arg5: memref<1x128xf32, #tpu.memory_space<vmem>>, %arg6: memref<128x128xf32, #tpu.memory_space<vmem>>, %arg7: memref<1x128xf32, #tpu.memory_space<vmem>>, %arg8: memref<16x128xf32, #tpu.memory_space<vmem>>) attributes {dimension_semantics = [#tpu.dimension_semantics<parallel>], iteration_bounds = array<i64: 1>, scalar_prefetch = 0 : i64, scratch_operands = 0 : i64, tpu.core_type = #tpu.core_type<tc>, window_params = [{transform_indices = @transform_0, window_bounds = array<i64: 16, 64>}, {pipeline_mode = #tpu.pipeline_mode<synchronous>, transform_indices = @transform_1, window_bounds = array<i64: 64, 128>}, {pipeline_mode = #tpu.pipeline_mode<synchronous>, transform_indices = @transform_2, window_bounds = array<i64: 1, 128>}, {pipeline_mode = #tpu.pipeline_mode<synchronous>, transform_indices = @transform_3, window_bounds = array<i64: 128, 128>}, {pipeline_mode = #tpu.pipeline_mode<synchronous>, transform_indices = @transform_4, window_bounds = array<i64: 1, 128>}, {pipeline_mode = #tpu.pipeline_mode<synchronous>, transform_indices = @transform_5, window_bounds = array<i64: 128, 128>}, {pipeline_mode = #tpu.pipeline_mode<synchronous>, transform_indices = @transform_6, window_bounds = array<i64: 1, 128>}, {transform_indices = @transform_7, window_bounds = array<i64: 16, 128>}]} {
    %c0 = arith.constant 0 : index
    %c0_0 = arith.constant 0 : index
    %0 = vector.load %arg1[%c0, %c0_0] : memref<16x64xf32, #tpu.memory_space<vmem>>, vector<16x64xf32>
    %c0_1 = arith.constant 0 : index
    %c0_2 = arith.constant 0 : index
    %1 = vector.load %arg2[%c0_1, %c0_2] : memref<64x128xf32, #tpu.memory_space<vmem>>, vector<64x128xf32>
    %cst = arith.constant dense<0.000000e+00> : vector<16x128xf32>
    %2 = tpu.matmul %0, %1, %cst {dimension_numbers = #tpu.dot_dimension_numbers<[1], [0], [0], [1], [0, 0, 1, 1], [], []>} : vector<16x64xf32>, vector<64x128xf32>, vector<16x128xf32> -> vector<16x128xf32>
    %c0_3 = arith.constant 0 : index
    %c0_4 = arith.constant 0 : index
    %3 = vector.load %arg3[%c0_3, %c0_4] : memref<1x128xf32, #tpu.memory_space<vmem>>, vector<1x128xf32>
    %4 = vector.broadcast %3 : vector<1x128xf32> to vector<16x128xf32>
    %5 = arith.addf %2, %4 : vector<16x128xf32>
    %6 = arith.negf %5 : vector<16x128xf32>
    %7 = math.exp %6 : vector<16x128xf32>
    %cst_5 = arith.constant 1.000000e+00 : f32
    %8 = vector.broadcast %cst_5 : f32 to vector<16x128xf32>
    %9 = arith.addf %8, %7 : vector<16x128xf32>
    %10 = arith.divf %8, %9 : vector<16x128xf32>
    %c0_6 = arith.constant 0 : index
    %c0_7 = arith.constant 0 : index
    %11 = vector.load %arg4[%c0_6, %c0_7] : memref<128x128xf32, #tpu.memory_space<vmem>>, vector<128x128xf32>
    %cst_8 = arith.constant dense<0.000000e+00> : vector<16x128xf32>
    %12 = tpu.matmul %10, %11, %cst_8 {dimension_numbers = #tpu.dot_dimension_numbers<[1], [0], [0], [1], [0, 0, 1, 1], [], []>} : vector<16x128xf32>, vector<128x128xf32>, vector<16x128xf32> -> vector<16x128xf32>
    %c0_9 = arith.constant 0 : index
    %c0_10 = arith.constant 0 : index
    %13 = vector.load %arg5[%c0_9, %c0_10] : memref<1x128xf32, #tpu.memory_space<vmem>>, vector<1x128xf32>
    %14 = vector.broadcast %13 : vector<1x128xf32> to vector<16x128xf32>
    %15 = arith.addf %12, %14 : vector<16x128xf32>
    %16 = arith.negf %15 : vector<16x128xf32>
    %17 = math.exp %16 : vector<16x128xf32>
    %cst_11 = arith.constant 1.000000e+00 : f32
    %18 = vector.broadcast %cst_11 : f32 to vector<16x128xf32>
    %19 = arith.addf %18, %17 : vector<16x128xf32>
    %20 = arith.divf %18, %19 : vector<16x128xf32>
    %c0_12 = arith.constant 0 : index
    %c0_13 = arith.constant 0 : index
    %21 = vector.load %arg6[%c0_12, %c0_13] : memref<128x128xf32, #tpu.memory_space<vmem>>, vector<128x128xf32>
    %cst_14 = arith.constant dense<0.000000e+00> : vector<16x128xf32>
    %22 = tpu.matmul %20, %21, %cst_14 {dimension_numbers = #tpu.dot_dimension_numbers<[1], [0], [0], [1], [0, 0, 1, 1], [], []>} : vector<16x128xf32>, vector<128x128xf32>, vector<16x128xf32> -> vector<16x128xf32>
    %c0_15 = arith.constant 0 : index
    %c0_16 = arith.constant 0 : index
    %23 = vector.load %arg7[%c0_15, %c0_16] : memref<1x128xf32, #tpu.memory_space<vmem>>, vector<1x128xf32>
    %24 = vector.broadcast %23 : vector<1x128xf32> to vector<16x128xf32>
    %25 = arith.addf %22, %24 : vector<16x128xf32>
    %26 = math.exp %25 : vector<16x128xf32>
    %c0_17 = arith.constant 0 : index
    %c0_18 = arith.constant 0 : index
    %27 = vector.load %arg8[%c0_17, %c0_18] : memref<16x128xf32, #tpu.memory_space<vmem>>, vector<16x128xf32>
    tpu.vector_store %arg8[%c0_17, %c0_18], %26 {strides = array<i32>} : memref<16x128xf32, #tpu.memory_space<vmem>>, vector<16x128xf32>,
    return
  }
  func.func @transform_0(%arg0: i32) -> (i32, i32) {
    %c0_i32 = arith.constant 0 : i32
    %c0_i32_0 = arith.constant 0 : i32
    return %arg0, %c0_i32 : i32, i32
  }
  func.func @transform_1(%arg0: i32) -> (i32, i32) {
    %c0_i32 = arith.constant 0 : i32
    %c0_i32_0 = arith.constant 0 : i32
    %c0_i32_1 = arith.constant 0 : i32
    return %c0_i32, %c0_i32_0 : i32, i32
  }
  func.func @transform_2(%arg0: i32) -> (i32, i32) {
    %c0_i32 = arith.constant 0 : i32
    %c0_i32_0 = arith.constant 0 : i32
    %c0_i32_1 = arith.constant 0 : i32
    return %c0_i32, %c0_i32_0 : i32, i32
  }
  func.func @transform_3(%arg0: i32) -> (i32, i32) {
    %c0_i32 = arith.constant 0 : i32
    %c0_i32_0 = arith.constant 0 : i32
    %c0_i32_1 = arith.constant 0 : i32
    return %c0_i32, %c0_i32_0 : i32, i32
  }
  func.func @transform_4(%arg0: i32) -> (i32, i32) {
    %c0_i32 = arith.constant 0 : i32
    %c0_i32_0 = arith.constant 0 : i32
    %c0_i32_1 = arith.constant 0 : i32
    return %c0_i32, %c0_i32_0 : i32, i32
  }
  func.func @transform_5(%arg0: i32) -> (i32, i32) {
    %c0_i32 = arith.constant 0 : i32
    %c0_i32_0 = arith.constant 0 : i32
    %c0_i32_1 = arith.constant 0 : i32
    return %c0_i32, %c0_i32_0 : i32, i32
  }
  func.func @transform_6(%arg0: i32) -> (i32, i32) {
    %c0_i32 = arith.constant 0 : i32
    %c0_i32_0 = arith.constant 0 : i32
    %c0_i32_1 = arith.constant 0 : i32
    return %c0_i32, %c0_i32_0 : i32, i32
  }
  func.func @transform_7(%arg0: i32) -> (i32, i32) {
    %c0_i32 = arith.constant 0 : i32
    %c0_i32_0 = arith.constant 0 : i32
    return %arg0, %c0_i32 : i32, i32
  }
}

</mosaic_0001>

<llo_original>
// kernel: tpu_custom_call.1
$region0: #{tpu_custom_call.1}
  #allocation0 [shape = 'u32[]', space=smem, size = 0x4, offset = 0x4, fixed_abs, tag = 'smem constant byte address 0x4 - core index']
  #allocation1 [shape = 'u32[72,128]{1,0:T(1,128)}', space=vmem, size = 0x9000, scoped, tag = 'internal scratch']
  %s0 = inlined_call_operand.hbm [shape: f32[16,64], index: 0, kind: input, shape index: {}]
  %s1 = inlined_call_operand.hbm [shape: f32[64,128], index: 1, kind: input, shape index: {}]
  %s2 = inlined_call_operand.vmem [shape: f32[1,128], index: 2, kind: input, shape index: {}]
  %s3 = inlined_call_operand.hbm [shape: f32[128,128], index: 3, kind: input, shape index: {}]
  %s4 = inlined_call_operand.vmem [shape: f32[1,128], index: 4, kind: input, shape index: {}]
  %s5 = inlined_call_operand.hbm [shape: f32[128,128], index: 5, kind: input, shape index: {}]
  %s6 = inlined_call_operand.vmem [shape: f32[1,128], index: 6, kind: input, shape index: {}]
  %s7 = inlined_call_operand.hbm [shape: f32[16,128], index: 7, kind: output, shape index: {}]
  %s8 = sld [smem:[#allocation0]]
  $region54: #{tpu_custom_call.1} parent=0
    _
  %s10 = ssub.s32 1, %s8
  %s11 = scalar_select 0, %s10, %s8
  $region1: #{tpu_custom_call.1} parent=0
    #allocation2 [shape = 'u8[8192]{0}', space=vmem, size = 0x2000, scoped, tag = 'input window, operand 0, single buffered']
    #allocation3 [shape = 's32[1]{0}', space=sflag, size = 0x4, scoped, tag = 'scoped memory for tpu_custom_call.1']
    #allocation4 [shape = 's32[1]{0}', space=sflag, size = 0x4, scoped, tag = 'scoped memory for tpu_custom_call.1']
    #allocation5 [shape = 'u8[32768]{0}', space=vmem, size = 0x8000, scoped, tag = 'input window, operand 1, single buffered']
    #allocation6 [shape = 's32[1]{0}', space=sflag, size = 0x4, scoped, tag = 'scoped memory for tpu_custom_call.1']
    #allocation7 [shape = 'u8[65536]{0}', space=vmem, size = 0x10000, scoped, tag = 'input window, operand 3, single buffered']
    #allocation8 [shape = 'u8[65536]{0}', space=vmem, size = 0x10000, scoped, tag = 'input window, operand 5, single buffered']
    #allocation9 [shape = 's32[1]{0}', space=sflag, size = 0x4, scoped, tag = 'scoped memory for tpu_custom_call.1']
    #allocation10 [shape = 'u8[8192]{0}', space=vmem, size = 0x2000, scoped, tag = 'output window, operand 0, single buffered']
    %12 = vsyncpa [#allocation3], 0
    %13 = vsyncpa [#allocation6], 0
    %14 = vsyncpa [#allocation9], 0
    %15 = vsyncpa [#allocation4], 0
    // Predicated region
    $region2: #{tpu_custom_call.1} parent=1 // pred_check
      _
    $region3: #{tpu_custom_call.1} parent=1 // pred_check_branch
      %17 = sbr.rel (0) target = $region5
    $region4: #{tpu_custom_call.1} parent=1 // pred_region
      %19 = vsyncadd [#allocation3], 0
      %s20 = sshll.u32 %s0, 4
      %s21 = int_to_ptr.hbm [resolvable:$true] %s20
      %s22 = sshll.u32 [#allocation2], 4
      %s23 = int_to_ptr.vmem [resolvable:$true] %s22
      %28 = dma.hbm_to_vmem [thread:$0]  %s21, 256, %s23, [#allocation3], 128, 128, 8
    $region5: #{tpu_custom_call.1} parent=1 // pred_fallthru
      _
    // Predicated region
    $region6: #{tpu_custom_call.1} parent=1 // pred_check
      _
    $region7: #{tpu_custom_call.1} parent=1 // pred_check_branch
      %30 = sbr.rel (0) target = $region9
    $region8: #{tpu_custom_call.1} parent=1 // pred_region
      %32 = vsyncadd [#allocation6], 0
      %s33 = sshll.u32 %s1, 4
      %s34 = int_to_ptr.hbm [resolvable:$true] %s33
      %s35 = sshll.u32 [#allocation5], 4
      %s36 = int_to_ptr.vmem [resolvable:$true] %s35
      %41 = dma.hbm_to_vmem [thread:$0]  %s34, 1024, %s36, [#allocation6], 128, 128, 8
    $region9: #{tpu_custom_call.1} parent=1 // pred_fallthru
      _
    // Predicated region
    $region10: #{tpu_custom_call.1} parent=1 // pred_check
      _
    $region11: #{tpu_custom_call.1} parent=1 // pred_check_branch
      %43 = sbr.rel (0) target = $region13
    $region12: #{tpu_custom_call.1} parent=1 // pred_region
      _
    $region13: #{tpu_custom_call.1} parent=1 // pred_fallthru
      _
    // Predicated region
    $region14: #{tpu_custom_call.1} parent=1 // pred_check
      _
    $region15: #{tpu_custom_call.1} parent=1 // pred_check_branch
      %45 = sbr.rel (0) target = $region17
    $region16: #{tpu_custom_call.1} parent=1 // pred_region
      %47 = vsyncadd [#allocation6], 0
      %s48 = sshll.u32 %s3, 4
      %s49 = int_to_ptr.hbm [resolvable:$true] %s48
      %s50 = sshll.u32 [#allocation7], 4
      %s51 = int_to_ptr.vmem [resolvable:$true] %s50
      %56 = dma.hbm_to_vmem [thread:$0]  %s49, 2048, %s51, [#allocation6], 128, 128, 8
    $region17: #{tpu_custom_call.1} parent=1 // pred_fallthru
      _
    // Predicated region
    $region18: #{tpu_custom_call.1} parent=1 // pred_check
      _
    $region19: #{tpu_custom_call.1} parent=1 // pred_check_branch
      %58 = sbr.rel (0) target = $region21
    $region20: #{tpu_custom_call.1} parent=1 // pred_region
      _
    $region21: #{tpu_custom_call.1} parent=1 // pred_fallthru
      _
    // Predicated region
    $region22: #{tpu_custom_call.1} parent=1 // pred_check
      _
    $region23: #{tpu_custom_call.1} parent=1 // pred_check_branch
      %60 = sbr.rel (0) target = $region25
    $region24: #{tpu_custom_call.1} parent=1 // pred_region
      %62 = vsyncadd [#allocation9], 0
      %s63 = sshll.u32 %s5, 4
      %s64 = int_to_ptr.hbm [resolvable:$true] %s63
      %s65 = sshll.u32 [#allocation8], 4
      %s66 = int_to_ptr.vmem [resolvable:$true] %s65
      %71 = dma.hbm_to_vmem [thread:$0]  %s64, 2048, %s66, [#allocation9], 128, 128, 8
    $region25: #{tpu_custom_call.1} parent=1 // pred_fallthru
      _
    // Predicated region
    $region26: #{tpu_custom_call.1} parent=1 // pred_check
      _
    $region27: #{tpu_custom_call.1} parent=1 // pred_check_branch
      %73 = sbr.rel (0) target = $region29
    $region28: #{tpu_custom_call.1} parent=1 // pred_region
      _
    $region29: #{tpu_custom_call.1} parent=1 // pred_fallthru
      _
    // Predicated region
    $region30: #{tpu_custom_call.1} parent=1 // pred_check
      _
    $region31: #{tpu_custom_call.1} parent=1 // pred_check_branch
      %75 = sbr.rel (0) target = $region33
    $region32: #{tpu_custom_call.1} parent=1 // pred_region
      %77 = dma.done [#allocation3], 256
    $region33: #{tpu_custom_call.1} parent=1 // pred_fallthru
      _
    // Predicated region
    $region34: #{tpu_custom_call.1} parent=1 // pred_check
      _
    $region35: #{tpu_custom_call.1} parent=1 // pred_check_branch
      %79 = sbr.rel (0) target = $region37
    $region36: #{tpu_custom_call.1} parent=1 // pred_region
      %81 = dma.done [#allocation6], 1024
    $region37: #{tpu_custom_call.1} parent=1 // pred_fallthru
      _
    // Predicated region
    $region38: #{tpu_custom_call.1} parent=1 // pred_check
      _
    $region39: #{tpu_custom_call.1} parent=1 // pred_check_branch
      %83 = sbr.rel (0) target = $region41
    $region40: #{tpu_custom_call.1} parent=1 // pred_region
      %85 = dma.done [#allocation6], 2048
    $region41: #{tpu_custom_call.1} parent=1 // pred_fallthru
      _
    // Predicated region
    $region42: #{tpu_custom_call.1} parent=1 // pred_check
      _
    $region43: #{tpu_custom_call.1} parent=1 // pred_check_branch
      %87 = sbr.rel (0) target = $region45
    $region44: #{tpu_custom_call.1} parent=1 // pred_region
      %89 = dma.done [#allocation9], 2048
    $region45: #{tpu_custom_call.1} parent=1 // pred_fallthru
      _
    %v90 = vld [vmem:[#allocation2] sm:$0xff]
    %v91 = vld [vmem:[#allocation2 + $0x8] sm:$0xff]
    %v92 = vld [vmem:[#allocation5] sm:$0xff]
    %v93 = vld [vmem:[#allocation5 + $0x8] sm:$0xff]
    %v94 = vld [vmem:[#allocation5 + $0x10] sm:$0xff]
    %v95 = vld [vmem:[#allocation5 + $0x18] sm:$0xff]
    %v96 = vld [vmem:[#allocation5 + $0x20] sm:$0xff]
    %v97 = vld [vmem:[#allocation5 + $0x28] sm:$0xff]
    %v98 = vld [vmem:[#allocation5 + $0x30] sm:$0xff]
    %v99 = vld [vmem:[#allocation5 + $0x38] sm:$0xff]
    %v100 = vld [vmem:[%s2] sm:$0x1]
    %v102 = vperm.slane %v100, 0
    %vm104 = vcmask 523264
    %v106 = vsel %vm104, %v90, 0
    %v109 = vsel %vm104, %v91, 0
    %111 = vmatpush.msra.mxu0 0.0
    %112 = vmatpush.msra.mxu0 0.0
    %113 = vmatpush.msra.mxu0 0.0
    %114 = vmatpush.msra.mxu0 0.0
    %115 = vmatpush.msra.mxu0 0.0
    %116 = vmatpush.msra.mxu0 0.0
    %117 = vmatpush.msra.mxu0 0.0
    %118 = vmatpush.msra.mxu0 0.0
    %119 = vmatpush.msra.mxu0 %v99
    %120 = vmatpush.msra.mxu0 %v98
    %121 = vmatpush.msra.mxu0 %v97
    %122 = vmatpush.msra.mxu0 %v96
    %123 = vmatpush.msra.mxu0 %v95
    %124 = vmatpush.msra.mxu0 %v94
    %125 = vmatpush.msra.mxu0 %v93
    %126 = vmatpush.msra.mxu0 %v92
    %127 = vmatmul.f32.gmra.mxu0 %v106
    %v128 = vpop.f32.mrf.mxu0
    %v129 = vadd.f32 %v102, %v128
    %130 = vmatmul.f32.gmra.mxu0 %v109
    %v131 = vpop.f32.mrf.mxu0
    %v132 = vadd.f32 %v102, %v131
    %133 = vdwg.mxu0
    %v134 = vxor.u32 %v129, 2147483648
    %v135 = vxor.u32 %v132, 2147483648
    %v136 = vmul.f32 %v134, 1.442695
    %v137 = vpow.pop %v136
    %v138 = vmul.f32 %v135, 1.442695
    %v139 = vpow.pop %v138
    %v140 = vadd.f32 %v137, 1.0
    %v141 = vadd.f32 %v139, 1.0
    %v142 = vrcp.pop %v140
    %v143 = vmul.f32 %v140, %v142
    %v144 = vsub.f32 1.0, %v143
    %v145 = vmul.f32 %v142, %v144
    %v146 = vadd.f32 %v142, %v145
    %vm147 = vweird.f32 %v140
    %vm148 = vweird.f32 %v142
    %vm149 = vmor %vm147, %vm148
    %v150 = vsel %vm149, %v142, %v146
    %v151 = vand.u32 2147483647, %v140
    %vm152 = vcmp.eq.f32.partialorder %v151, 8.507059e+37
    %v153 = vand.u32 %v140, 2147483648
    %v154 = vor.u32 1.1754944e-38, %v153
    %v155 = vsel %vm152, %v154, %v150
    %v156 = vmul.f32 1.0, %v155
    %v157 = vrcp.pop %v141
    %v158 = vmul.f32 %v141, %v157
    %v159 = vsub.f32 1.0, %v158
    %v160 = vmul.f32 %v157, %v159
    %v161 = vadd.f32 %v157, %v160
    %vm162 = vweird.f32 %v141
    %vm163 = vweird.f32 %v157
    %vm164 = vmor %vm162, %vm163
    %v165 = vsel %vm164, %v157, %v161
    %v166 = vand.u32 2147483647, %v141
    %vm167 = vcmp.eq.f32.partialorder %v166, 8.507059e+37
    %v168 = vand.u32 %v141, 2147483648
    %v169 = vor.u32 1.1754944e-38, %v168
    %v170 = vsel %vm167, %v169, %v165
    %v171 = vmul.f32 1.0, %v170
    %v172 = vld [vmem:[#allocation7] sm:$0xff]
    %v173 = vld [vmem:[#allocation7 + $0x8] sm:$0xff]
    %v174 = vld [vmem:[#allocation7 + $0x10] sm:$0xff]
    %v175 = vld [vmem:[#allocation7 + $0x18] sm:$0xff]
    %v176 = vld [vmem:[#allocation7 + $0x20] sm:$0xff]
    %v177 = vld [vmem:[#allocation7 + $0x28] sm:$0xff]
    %v178 = vld [vmem:[#allocation7 + $0x30] sm:$0xff]
    %v179 = vld [vmem:[#allocation7 + $0x38] sm:$0xff]
    %v180 = vld [vmem:[#allocation7 + $0x40] sm:$0xff]
    %v181 = vld [vmem:[#allocation7 + $0x48] sm:$0xff]
    %v182 = vld [vmem:[#allocation7 + $0x50] sm:$0xff]
    %v183 = vld [vmem:[#allocation7 + $0x58] sm:$0xff]
    %v184 = vld [vmem:[#allocation7 + $0x60] sm:$0xff]
    %v185 = vld [vmem:[#allocation7 + $0x68] sm:$0xff]
    %v186 = vld [vmem:[#allocation7 + $0x70] sm:$0xff]
    %v187 = vld [vmem:[#allocation7 + $0x78] sm:$0xff]
    %v188 = vld [vmem:[%s4] sm:$0x1]
    %v190 = vperm.slane %v188, 0
    %192 = vmatpush.msra.mxu0 %v187
    %193 = vmatpush.msra.mxu0 %v186
    %194 = vmatpush.msra.mxu0 %v185
    %195 = vmatpush.msra.mxu0 %v184
    %196 = vmatpush.msra.mxu0 %v183
    %197 = vmatpush.msra.mxu0 %v182
    %198 = vmatpush.msra.mxu0 %v181
    %199 = vmatpush.msra.mxu0 %v180
    %200 = vmatpush.msra.mxu0 %v179
    %201 = vmatpush.msra.mxu0 %v178
    %202 = vmatpush.msra.mxu0 %v177
    %203 = vmatpush.msra.mxu0 %v176
    %204 = vmatpush.msra.mxu0 %v175
    %205 = vmatpush.msra.mxu0 %v174
    %206 = vmatpush.msra.mxu0 %v173
    %207 = vmatpush.msra.mxu0 %v172
    %208 = vmatmul.f32.gmra.mxu0 %v156
    %v209 = vpop.f32.mrf.mxu0
    %v210 = vadd.f32 %v190, %v209
    %211 = vmatmul.f32.gmra.mxu0 %v171
    %v212 = vpop.f32.mrf.mxu0
    %v213 = vadd.f32 %v190, %v212
    %214 = vdwg.mxu0
    %v215 = vxor.u32 %v210, 2147483648
    %v216 = vxor.u32 %v213, 2147483648
    %v217 = vmul.f32 %v215, 1.442695
    %v218 = vpow.pop %v217
    %v219 = vmul.f32 %v216, 1.442695
    %v220 = vpow.pop %v219
    %v221 = vadd.f32 %v218, 1.0
    %v222 = vadd.f32 %v220, 1.0
    %v223 = vrcp.pop %v221
    %v224 = vmul.f32 %v221, %v223
    %v225 = vsub.f32 1.0, %v224
    %v226 = vmul.f32 %v223, %v225
    %v227 = vadd.f32 %v223, %v226
    %vm228 = vweird.f32 %v221
    %vm229 = vweird.f32 %v223
    %vm230 = vmor %vm228, %vm229
    %v231 = vsel %vm230, %v223, %v227
    %v232 = vand.u32 2147483647, %v221
    %vm233 = vcmp.eq.f32.partialorder %v232, 8.507059e+37
    %v234 = vand.u32 %v221, 2147483648
    %v235 = vor.u32 1.1754944e-38, %v234
    %v236 = vsel %vm233, %v235, %v231
    %v237 = vmul.f32 1.0, %v236
    %v238 = vrcp.pop %v222
    %v239 = vmul.f32 %v222, %v238
    %v240 = vsub.f32 1.0, %v239
    %v241 = vmul.f32 %v238, %v240
    %v242 = vadd.f32 %v238, %v241
    %vm243 = vweird.f32 %v222
    %vm244 = vweird.f32 %v238
    %vm245 = vmor %vm243, %vm244
    %v246 = vsel %vm245, %v238, %v242
    %v247 = vand.u32 2147483647, %v222
    %vm248 = vcmp.eq.f32.partialorder %v247, 8.507059e+37
    %v249 = vand.u32 %v222, 2147483648
    %v250 = vor.u32 1.1754944e-38, %v249
    %v251 = vsel %vm248, %v250, %v246
    %v252 = vmul.f32 1.0, %v251
    %v253 = vld [vmem:[#allocation8] sm:$0xff]
    %v254 = vld [vmem:[#allocation8 + $0x8] sm:$0xff]
    %v255 = vld [vmem:[#allocation8 + $0x10] sm:$0xff]
    %v256 = vld [vmem:[#allocation8 + $0x18] sm:$0xff]
    %v257 = vld [vmem:[#allocation8 + $0x20] sm:$0xff]
    %v258 = vld [vmem:[#allocation8 + $0x28] sm:$0xff]
    %v259 = vld [vmem:[#allocation8 + $0x30] sm:$0xff]
    %v260 = vld [vmem:[#allocation8 + $0x38] sm:$0xff]
    %v261 = vld [vmem:[#allocation8 + $0x40] sm:$0xff]
    %v262 = vld [vmem:[#allocation8 + $0x48] sm:$0xff]
    %v263 = vld [vmem:[#allocation8 + $0x50] sm:$0xff]
    %v264 = vld [vmem:[#allocation8 + $0x58] sm:$0xff]
    %v265 = vld [vmem:[#allocation8 + $0x60] sm:$0xff]
    %v266 = vld [vmem:[#allocation8 + $0x68] sm:$0xff]
    %v267 = vld [vmem:[#allocation8 + $0x70] sm:$0xff]
    %v268 = vld [vmem:[#allocation8 + $0x78] sm:$0xff]
    %v269 = vld [vmem:[%s6] sm:$0x1]
    %v271 = vperm.slane %v269, 0
    %273 = vmatpush.msra.mxu0 %v268
    %274 = vmatpush.msra.mxu0 %v267
    %275 = vmatpush.msra.mxu0 %v266
    %276 = vmatpush.msra.mxu0 %v265
    %277 = vmatpush.msra.mxu0 %v264
    %278 = vmatpush.msra.mxu0 %v263
    %279 = vmatpush.msra.mxu0 %v262
    %280 = vmatpush.msra.mxu0 %v261
    %281 = vmatpush.msra.mxu0 %v260
    %282 = vmatpush.msra.mxu0 %v259
    %283 = vmatpush.msra.mxu0 %v258
    %284 = vmatpush.msra.mxu0 %v257
    %285 = vmatpush.msra.mxu0 %v256
    %286 = vmatpush.msra.mxu0 %v255
    %287 = vmatpush.msra.mxu0 %v254
    %288 = vmatpush.msra.mxu0 %v253
    %289 = vmatmul.f32.gmra.mxu0 %v237
    %v290 = vpop.f32.mrf.mxu0
    %v291 = vadd.f32 %v271, %v290
    %292 = vmatmul.f32.gmra.mxu0 %v252
    %v293 = vpop.f32.mrf.mxu0
    %v294 = vadd.f32 %v271, %v293
    %295 = vdwg.mxu0
    %v296 = vmul.f32 %v291, 1.442695
    %v297 = vpow.pop %v296
    %v298 = vmul.f32 %v294, 1.442695
    %v299 = vpow.pop %v298
    %300 = vst [vmem:[#allocation10] sm:$0xff] %v297
    %301 = vst [vmem:[#allocation10 + $0x8] sm:$0xff] %v299
    // Predicated region
    $region46: #{tpu_custom_call.1} parent=1 // pred_check
      _
    $region47: #{tpu_custom_call.1} parent=1 // pred_check_branch
      %303 = sbr.rel (0) target = $region49
    $region48: #{tpu_custom_call.1} parent=1 // pred_region
      %305 = vsyncadd [#allocation4], 0
      %s306 = sshll.u32 [#allocation10], 4
      %s307 = int_to_ptr.vmem [resolvable:$true] %s306
      %s308 = sshll.u32 %s7, 4
      %s309 = int_to_ptr.hbm [resolvable:$true] %s308
      %314 = dma.vmem_to_hbm [thread:$0]  %s307, 256, %s309, [#allocation4], 128, 128, 8
    $region49: #{tpu_custom_call.1} parent=1 // pred_fallthru
      _
    // Predicated region
    $region50: #{tpu_custom_call.1} parent=1 // pred_check
      _
    $region51: #{tpu_custom_call.1} parent=1 // pred_check_branch
      %316 = sbr.rel (0) target = $region53
    $region52: #{tpu_custom_call.1} parent=1 // pred_region
      %318 = dma.done [#allocation4], 256
    $region53: #{tpu_custom_call.1} parent=1 // pred_fallthru
      _
    %319 = vsyncpa [#allocation3], 1
    %320 = vsyncpa [#allocation6], 1
    %321 = vsyncpa [#allocation9], 1
    %322 = vsyncpa [#allocation4], 1

</llo_original>
